<compile_context>
chip_gen: v6e
topology: v6e:2x2x1
jax: 0.10.0
libtpu: 0.0.40
codegen_flags: <defaults>
</compile_context>

<pallas_src>
import jax
import jax.numpy as jnp
from jax.experimental import pallas as pl
from jax.experimental.pallas import tpu as pltpu

ACTION_EMBED_DIM = 128
HID1 = 128
HID2 = 64
OUT_PAD = 128          # lane-dense padded output width
LN_EPS = 1e-5


def _layer_norm(x, gamma, beta):
    # Single pass over x feeds both reductions; rsqrt*gamma folded into one
    # per-row/per-lane scale before the broadcast multiply.
    mu = jnp.mean(x, axis=-1, keepdims=True)
    var = jnp.maximum(jnp.mean(x * x, axis=-1, keepdims=True) - mu * mu, 0.0)
    scale = jax.lax.rsqrt(var + LN_EPS) * gamma
    return (x - mu) * scale + beta


def critic_kernel(state_ref, act_ref,
                  w_ae_ref, b_ae_ref,
                  w1s_ref, w1a_ref, b1_ref, g1_ref, be1_ref,
                  w2_ref, b2_ref, g2_ref, be2_ref,
                  w3_ref, b3_ref,
                  out_ref):
    # f32 tiles streamed from HBM; cast to bf16 on the VPU (near-free slot)
    # right before the MXU ops.
    s = state_ref[...].astype(jnp.bfloat16)   # [tb, S]
    a = act_ref[...].astype(jnp.bfloat16)     # [tb, A]

    # action_embedder: Linear(action_dim, 128) + ReLU   (bf16 MXU, f32 acc)
    ae = jnp.dot(a, w_ae_ref[...], preferred_element_type=jnp.float32) + b_ae_ref[...]
    ae = jnp.maximum(ae, 0.0)

    # mlp[0]: Linear(S + 128, 128) realized as a split matmul.  The s @ W1_s
    # matmul is data-independent of the action-embedder chain; kept textually
    # independent so the LLO scheduler overlaps them on the MXU pipeline.
    h = (jnp.dot(s, w1s_ref[...], preferred_element_type=jnp.float32)
         + jnp.dot(ae.astype(jnp.bfloat16), w1a_ref[...],
                   preferred_element_type=jnp.float32)
         + b1_ref[...])
    # mlp[1]: ReLU ; mlp[2]: LayerNorm(128)   (f32 VPU / EUP)
    h = jnp.maximum(h, 0.0)
    h = _layer_norm(h, g1_ref[...], be1_ref[...])

    # mlp[3]: Linear(128, 64) ; mlp[4]: ReLU ; mlp[5]: LayerNorm(64)
    h2 = jnp.dot(h.astype(jnp.bfloat16), w2_ref[...],
                 preferred_element_type=jnp.float32) + b2_ref[...]
    h2 = jnp.maximum(h2, 0.0)
    h2 = _layer_norm(h2, g2_ref[...], be2_ref[...])

    # mlp[6]: Linear(64, output_dim) -- weights padded to 128 output lanes
    # (zero columns) so this store is lane-dense (unmasked vst).
    out = jnp.dot(h2.astype(jnp.bfloat16), w3_ref[...],
                  preferred_element_type=jnp.float32) + b3_ref[...]
    out_ref[...] = out


def _pick_batch_tile(B, S, A, vmem_budget_bytes=12 << 20):
    """Largest MXU-aligned batch tile that fits a conservative, generation-safe
    VMEM budget (v5e 16 MiB scoped default / v7x 64 MiB physical) while giving
    >= 4 grid steps when the batch allows (>= 2 per TensorCore on v7x)."""
    bytes_per_row = (2 * (S + A) * 4          # f32 input tiles, 2 bufs each
                     + 2 * OUT_PAD * 4        # f32 padded output tile, 2 bufs
                     + 2 * (ACTION_EMBED_DIM + HID1 + HID2) * 4)  # f32 temps
    max_rows = max(8, vmem_budget_bytes // bytes_per_row)
    target_steps = 4
    for tb in (4096, 2048, 1024, 512, 256, 128, 64, 32, 16, 8):
        if tb > max_rows:
            continue
        if pl.cdiv(B, tb) >= target_steps or tb == 8:
            return tb
    return 8


def critic_forward(state_embedding, actions, params, output_dim, *, batch_tile=None):
    B, S = state_embedding.shape
    _, A = actions.shape

    tb = _pick_batch_tile(B, S, A) if batch_tile is None else batch_tile
    n_steps = pl.cdiv(B, tb)
    Bp = n_steps * tb
    if Bp != B:
        pad = Bp - B
        state_embedding = jnp.pad(state_embedding, ((0, pad), (0, 0)))
        actions = jnp.pad(actions, ((0, pad), (0, 0)))

    matmul_flops = 2 * Bp * (A * ACTION_EMBED_DIM + S * HID1
                             + ACTION_EMBED_DIM * HID1 + HID1 * HID2
                             + HID2 * OUT_PAD)
    weight_bytes = 2 * (A * ACTION_EMBED_DIM + S * HID1 + ACTION_EMBED_DIM * HID1
                        + HID1 * HID2 + HID2 * OUT_PAD)
    smallvec_bytes = 4 * (ACTION_EMBED_DIM + 3 * HID1 + 3 * HID2 + OUT_PAD)
    cost = pl.CostEstimate(
        flops=matmul_flops,
        transcendentals=2 * Bp,  # two rsqrts per row (the LayerNorms)
        bytes_accessed=Bp * (S + A) * 4 + Bp * OUT_PAD * 4
                       + weight_bytes + smallvec_bytes,
    )

    batch_spec = lambda feat: pl.BlockSpec((tb, feat), lambda i: (i, 0))
    full_spec = lambda r, c: pl.BlockSpec((r, c), lambda i: (0, 0))

    in_specs = [
        batch_spec(S),                       # state_embedding (f32)
        batch_spec(A),                       # actions (f32)
        full_spec(A, ACTION_EMBED_DIM),      # w_ae
        full_spec(1, ACTION_EMBED_DIM),      # b_ae
        full_spec(S, HID1),                  # w1_s
        full_spec(ACTION_EMBED_DIM, HID1),   # w1_a
        full_spec(1, HID1),                  # b1
        full_spec(1, HID1),                  # ln1 gamma
        full_spec(1, HID1),                  # ln1 beta
        full_spec(HID1, HID2),               # w2
        full_spec(1, HID2),                  # b2
        full_spec(1, HID2),                  # ln2 gamma
        full_spec(1, HID2),                  # ln2 beta
        full_spec(HID2, OUT_PAD),            # w3 (padded)
        full_spec(1, OUT_PAD),               # b3 (padded)
    ]

    out_padded = pl.pallas_call(
        critic_kernel,
        out_shape=jax.ShapeDtypeStruct((Bp, OUT_PAD), jnp.float32),
        grid_spec=pltpu.PrefetchScalarGridSpec(
            num_scalar_prefetch=0,
            grid=(n_steps,),
            in_specs=in_specs,
            out_specs=pl.BlockSpec((tb, OUT_PAD), lambda i: (i, 0)),
        ),
        compiler_params=pltpu.CompilerParams(
            dimension_semantics=("parallel",),
            vmem_limit_bytes=32 << 20),
        cost_estimate=cost,
    )(state_embedding, actions,
      params["w_ae"], params["b_ae"],
      params["w1_s"], params["w1_a"], params["b1"], params["g1"], params["be1"],
      params["w2"], params["b2"], params["g2"], params["be2"],
      params["w3"], params["b3"])

    return out_padded[:B, :output_dim]


def init_params(key, state_embed_dim, action_dim, output_dim):
    """Deterministic init mimicking nn.Linear default (U[-1/sqrt(fan_in), ...]).
    Matmul weights stored bf16 (MXU-native); biases/LN params f32.  The last
    Linear's weight/bias are zero-padded to 128 output lanes."""
    def linear(k, fan_in, fan_out):
        kw, kb = jax.random.split(k)
        bound = 1.0 / jnp.sqrt(fan_in)
        w = jax.random.uniform(kw, (fan_in, fan_out), jnp.float32, -bound, bound)
        b = jax.random.uniform(kb, (1, fan_out), jnp.float32, -bound, bound)
        return w, b

    k_ae, k1, k2, k3 = jax.random.split(key, 4)
    w_ae, b_ae = linear(k_ae, action_dim, ACTION_EMBED_DIM)
    cat_dim = state_embed_dim + ACTION_EMBED_DIM
    w1, b1 = linear(k1, cat_dim, HID1)
    w2, b2 = linear(k2, HID1, HID2)
    w3, b3 = linear(k3, HID2, output_dim)

    # Pad final layer to lane-dense 128 outputs with zero columns (sliced off
    # in the wrapper, so the padding never leaks into results).
    w3_pad = jnp.zeros((HID2, OUT_PAD), jnp.float32).at[:, :output_dim].set(w3)
    b3_pad = jnp.zeros((1, OUT_PAD), jnp.float32).at[:, :output_dim].set(b3)

    bf = lambda w: w.astype(jnp.bfloat16)
    return {
        "w_ae": bf(w_ae), "b_ae": b_ae,
        # first mlp Linear weight split along its input dim (concat order:
        # [state_embedding, action_embedding])
        "w1_s": bf(w1[:state_embed_dim]), "w1_a": bf(w1[state_embed_dim:]), "b1": b1,
        "g1": jnp.ones((1, HID1), jnp.float32), "be1": jnp.zeros((1, HID1), jnp.float32),
        "w2": bf(w2), "b2": b2,
        "g2": jnp.ones((1, HID2), jnp.float32), "be2": jnp.zeros((1, HID2), jnp.float32),
        "w3": bf(w3_pad), "b3": b3_pad,
    }


def critic_reference(state_embedding, actions, p, output_dim):
    """Pure-JAX reference matching the PyTorch forward with the same bf16-MXU /
    f32-accumulate numerics as the kernel."""
    s = state_embedding.astype(jnp.bfloat16)
    a = actions.astype(jnp.bfloat16)
    ae = jnp.dot(a, p["w_ae"], preferred_element_type=jnp.float32) + p["b_ae"]
    ae = jnp.maximum(ae, 0.0)
    h = (jnp.dot(s, p["w1_s"], preferred_element_type=jnp.float32)
         + jnp.dot(ae.astype(jnp.bfloat16), p["w1_a"],
                   preferred_element_type=jnp.float32)
         + p["b1"])
    h = jnp.maximum(h, 0.0)
    h = _layer_norm(h, p["g1"], p["be1"])
    h2 = jnp.dot(h.astype(jnp.bfloat16), p["w2"],
                 preferred_element_type=jnp.float32) + p["b2"]
    h2 = jnp.maximum(h2, 0.0)
    h2 = _layer_norm(h2, p["g2"], p["be2"])
    out = jnp.dot(h2.astype(jnp.bfloat16), p["w3"],
                  preferred_element_type=jnp.float32) + p["b3"]
    return out[:, :output_dim]


if __name__ == "__main__":
    B = 8
    STATE_EMBED_DIM = 32
    ACTION_DIM = 16
    OUTPUT_DIM = 4

    key = jax.random.PRNGKey(0)
    k_s, k_a, k_p = jax.random.split(key, 3)
    state_embedding = jax.random.normal(k_s, (B, STATE_EMBED_DIM), jnp.float32)
    actions = jax.random.normal(k_a, (B, ACTION_DIM), jnp.float32)
    params = init_params(k_p, STATE_EMBED_DIM, ACTION_DIM, OUTPUT_DIM)

    out = jax.block_until_ready(
        critic_forward(state_embedding, actions, params, OUTPUT_DIM))
    ref = jax.block_until_ready(
        critic_reference(state_embedding, actions, params, OUTPUT_DIM))

    assert out.shape == (B, OUTPUT_DIM)
    assert jnp.allclose(out, ref, atol=1e-2, rtol=1e-2), "mismatch vs reference"

    print("KERNEL_OK")
</pallas_src>

<mosaic_0001>
module attributes {stable_mosaic.version = 11 : i64} {
  func.func @critic_kernel(%arg0: i32, %arg1: memref<8x32xf32, #tpu.memory_space<vmem>>, %arg2: memref<8x16xf32, #tpu.memory_space<vmem>>, %arg3: memref<16x128xbf16, #tpu.memory_space<vmem>>, %arg4: memref<1x128xf32, #tpu.memory_space<vmem>>, %arg5: memref<32x128xbf16, #tpu.memory_space<vmem>>, %arg6: memref<128x128xbf16, #tpu.memory_space<vmem>>, %arg7: memref<1x128xf32, #tpu.memory_space<vmem>>, %arg8: memref<1x128xf32, #tpu.memory_space<vmem>>, %arg9: memref<1x128xf32, #tpu.memory_space<vmem>>, %arg10: memref<128x64xbf16, #tpu.memory_space<vmem>>, %arg11: memref<1x64xf32, #tpu.memory_space<vmem>>, %arg12: memref<1x64xf32, #tpu.memory_space<vmem>>, %arg13: memref<1x64xf32, #tpu.memory_space<vmem>>, %arg14: memref<64x128xbf16, #tpu.memory_space<vmem>>, %arg15: memref<1x128xf32, #tpu.memory_space<vmem>>, %arg16: memref<8x128xf32, #tpu.memory_space<vmem>>) attributes {dimension_semantics = [#tpu.dimension_semantics<parallel>], iteration_bounds = array<i64: 1>, scalar_prefetch = 0 : i64, scratch_operands = 0 : i64, tpu.core_type = #tpu.core_type<tc>, window_params = [{transform_indices = @transform_0, window_bounds = array<i64: 8, 32>}, {transform_indices = @transform_1, window_bounds = array<i64: 8, 16>}, {pipeline_mode = #tpu.pipeline_mode<synchronous>, transform_indices = @transform_2, window_bounds = array<i64: 16, 128>}, {pipeline_mode = #tpu.pipeline_mode<synchronous>, transform_indices = @transform_3, window_bounds = array<i64: 1, 128>}, {pipeline_mode = #tpu.pipeline_mode<synchronous>, transform_indices = @transform_4, window_bounds = array<i64: 32, 128>}, {pipeline_mode = #tpu.pipeline_mode<synchronous>, transform_indices = @transform_5, window_bounds = array<i64: 128, 128>}, {pipeline_mode = #tpu.pipeline_mode<synchronous>, transform_indices = @transform_6, window_bounds = array<i64: 1, 128>}, {pipeline_mode = #tpu.pipeline_mode<synchronous>, transform_indices = @transform_7, window_bounds = array<i64: 1, 128>}, {pipeline_mode = #tpu.pipeline_mode<synchronous>, transform_indices = @transform_8, window_bounds = array<i64: 1, 128>}, {pipeline_mode = #tpu.pipeline_mode<synchronous>, transform_indices = @transform_9, window_bounds = array<i64: 128, 64>}, {pipeline_mode = #tpu.pipeline_mode<synchronous>, transform_indices = @transform_10, window_bounds = array<i64: 1, 64>}, {pipeline_mode = #tpu.pipeline_mode<synchronous>, transform_indices = @transform_11, window_bounds = array<i64: 1, 64>}, {pipeline_mode = #tpu.pipeline_mode<synchronous>, transform_indices = @transform_12, window_bounds = array<i64: 1, 64>}, {pipeline_mode = #tpu.pipeline_mode<synchronous>, transform_indices = @transform_13, window_bounds = array<i64: 64, 128>}, {pipeline_mode = #tpu.pipeline_mode<synchronous>, transform_indices = @transform_14, window_bounds = array<i64: 1, 128>}, {transform_indices = @transform_15, window_bounds = array<i64: 8, 128>}]} {
    %c0 = arith.constant 0 : index
    %c0_0 = arith.constant 0 : index
    %0 = vector.load %arg1[%c0, %c0_0] : memref<8x32xf32, #tpu.memory_space<vmem>>, vector<8x32xf32>
    %1 = arith.truncf %0 : vector<8x32xf32> to vector<8x32xbf16>
    %c0_1 = arith.constant 0 : index
    %c0_2 = arith.constant 0 : index
    %2 = vector.load %arg2[%c0_1, %c0_2] : memref<8x16xf32, #tpu.memory_space<vmem>>, vector<8x16xf32>
    %3 = arith.truncf %2 : vector<8x16xf32> to vector<8x16xbf16>
    %c0_3 = arith.constant 0 : index
    %c0_4 = arith.constant 0 : index
    %4 = vector.load %arg3[%c0_3, %c0_4] : memref<16x128xbf16, #tpu.memory_space<vmem>>, vector<16x128xbf16>
    %cst = arith.constant dense<0.000000e+00> : vector<8x128xf32>
    %5 = tpu.matmul %3, %4, %cst {dimension_numbers = #tpu.dot_dimension_numbers<[1], [0], [0], [1], [0, 0, 1, 1], [], []>} : vector<8x16xbf16>, vector<16x128xbf16>, vector<8x128xf32> -> vector<8x128xf32>
    %c0_5 = arith.constant 0 : index
    %c0_6 = arith.constant 0 : index
    %6 = vector.load %arg4[%c0_5, %c0_6] : memref<1x128xf32, #tpu.memory_space<vmem>>, vector<1x128xf32>
    %7 = vector.broadcast %6 : vector<1x128xf32> to vector<8x128xf32>
    %8 = arith.addf %5, %7 : vector<8x128xf32>
    %cst_7 = arith.constant 0.000000e+00 : f32
    %9 = vector.broadcast %cst_7 : f32 to vector<8x128xf32>
    %10 = arith.maximumf %8, %9 : vector<8x128xf32>
    %c0_8 = arith.constant 0 : index
    %c0_9 = arith.constant 0 : index
    %11 = vector.load %arg5[%c0_8, %c0_9] : memref<32x128xbf16, #tpu.memory_space<vmem>>, vector<32x128xbf16>
    %cst_10 = arith.constant dense<0.000000e+00> : vector<8x128xf32>
    %12 = tpu.matmul %1, %11, %cst_10 {dimension_numbers = #tpu.dot_dimension_numbers<[1], [0], [0], [1], [0, 0, 1, 1], [], []>} : vector<8x32xbf16>, vector<32x128xbf16>, vector<8x128xf32> -> vector<8x128xf32>
    %13 = arith.truncf %10 : vector<8x128xf32> to vector<8x128xbf16>
    %c0_11 = arith.constant 0 : index
    %c0_12 = arith.constant 0 : index
    %14 = vector.load %arg6[%c0_11, %c0_12] : memref<128x128xbf16, #tpu.memory_space<vmem>>, vector<128x128xbf16>
    %cst_13 = arith.constant dense<0.000000e+00> : vector<8x128xf32>
    %15 = tpu.matmul %13, %14, %cst_13 {dimension_numbers = #tpu.dot_dimension_numbers<[1], [0], [0], [1], [0, 0, 1, 1], [], []>} : vector<8x128xbf16>, vector<128x128xbf16>, vector<8x128xf32> -> vector<8x128xf32>
    %16 = arith.addf %12, %15 : vector<8x128xf32>
    %c0_14 = arith.constant 0 : index
    %c0_15 = arith.constant 0 : index
    %17 = vector.load %arg7[%c0_14, %c0_15] : memref<1x128xf32, #tpu.memory_space<vmem>>, vector<1x128xf32>
    %18 = vector.broadcast %17 : vector<1x128xf32> to vector<8x128xf32>
    %19 = arith.addf %16, %18 : vector<8x128xf32>
    %cst_16 = arith.constant 0.000000e+00 : f32
    %20 = vector.broadcast %cst_16 : f32 to vector<8x128xf32>
    %21 = arith.maximumf %19, %20 : vector<8x128xf32>
    %c0_17 = arith.constant 0 : index
    %c0_18 = arith.constant 0 : index
    %22 = vector.load %arg8[%c0_17, %c0_18] : memref<1x128xf32, #tpu.memory_space<vmem>>, vector<1x128xf32>
    %c0_19 = arith.constant 0 : index
    %c0_20 = arith.constant 0 : index
    %23 = vector.load %arg9[%c0_19, %c0_20] : memref<1x128xf32, #tpu.memory_space<vmem>>, vector<1x128xf32>
    %cst_21 = arith.constant dense<0.000000e+00> : vector<8xf32>
    %24 = vector.multi_reduction <add>, %21, %cst_21 [1] : vector<8x128xf32> to vector<8xf32>
    %25 = vector.shape_cast %24 : vector<8xf32> to vector<8x1xf32>
    %cst_22 = arith.constant 1.280000e+02 : f32
    %26 = vector.broadcast %cst_22 : f32 to vector<8x1xf32>
    %27 = arith.divf %25, %26 : vector<8x1xf32>
    %28 = arith.mulf %21, %21 : vector<8x128xf32>
    %cst_23 = arith.constant dense<0.000000e+00> : vector<8xf32>
    %29 = vector.multi_reduction <add>, %28, %cst_23 [1] : vector<8x128xf32> to vector<8xf32>
    %30 = vector.shape_cast %29 : vector<8xf32> to vector<8x1xf32>
    %cst_24 = arith.constant 1.280000e+02 : f32
    %31 = vector.broadcast %cst_24 : f32 to vector<8x1xf32>
    %32 = arith.divf %30, %31 : vector<8x1xf32>
    %33 = arith.mulf %27, %27 : vector<8x1xf32>
    %34 = arith.subf %32, %33 : vector<8x1xf32>
    %cst_25 = arith.constant 0.000000e+00 : f32
    %35 = vector.broadcast %cst_25 : f32 to vector<8x1xf32>
    %36 = arith.maximumf %34, %35 : vector<8x1xf32>
    %cst_26 = arith.constant 9.99999974E-6 : f32
    %37 = vector.broadcast %cst_26 : f32 to vector<8x1xf32>
    %38 = arith.addf %36, %37 : vector<8x1xf32>
    %39 = math.rsqrt %38 : vector<8x1xf32>
    %40 = vector.broadcast %39 : vector<8x1xf32> to vector<8x128xf32>
    %41 = vector.broadcast %22 : vector<1x128xf32> to vector<8x128xf32>
    %42 = arith.mulf %40, %41 : vector<8x128xf32>
    %43 = vector.broadcast %27 : vector<8x1xf32> to vector<8x128xf32>
    %44 = arith.subf %21, %43 : vector<8x128xf32>
    %45 = arith.mulf %44, %42 : vector<8x128xf32>
    %46 = vector.broadcast %23 : vector<1x128xf32> to vector<8x128xf32>
    %47 = arith.addf %45, %46 : vector<8x128xf32>
    %48 = arith.truncf %47 : vector<8x128xf32> to vector<8x128xbf16>
    %c0_27 = arith.constant 0 : index
    %c0_28 = arith.constant 0 : index
    %49 = vector.load %arg10[%c0_27, %c0_28] : memref<128x64xbf16, #tpu.memory_space<vmem>>, vector<128x64xbf16>
    %cst_29 = arith.constant dense<0.000000e+00> : vector<8x64xf32>
    %50 = tpu.matmul %48, %49, %cst_29 {dimension_numbers = #tpu.dot_dimension_numbers<[1], [0], [0], [1], [0, 0, 1, 1], [], []>} : vector<8x128xbf16>, vector<128x64xbf16>, vector<8x64xf32> -> vector<8x64xf32>
    %c0_30 = arith.constant 0 : index
    %c0_31 = arith.constant 0 : index
    %51 = vector.load %arg11[%c0_30, %c0_31] : memref<1x64xf32, #tpu.memory_space<vmem>>, vector<1x64xf32>
    %52 = vector.broadcast %51 : vector<1x64xf32> to vector<8x64xf32>
    %53 = arith.addf %50, %52 : vector<8x64xf32>
    %cst_32 = arith.constant 0.000000e+00 : f32
    %54 = vector.broadcast %cst_32 : f32 to vector<8x64xf32>
    %55 = arith.maximumf %53, %54 : vector<8x64xf32>
    %c0_33 = arith.constant 0 : index
    %c0_34 = arith.constant 0 : index
    %56 = vector.load %arg12[%c0_33, %c0_34] : memref<1x64xf32, #tpu.memory_space<vmem>>, vector<1x64xf32>
    %c0_35 = arith.constant 0 : index
    %c0_36 = arith.constant 0 : index
    %57 = vector.load %arg13[%c0_35, %c0_36] : memref<1x64xf32, #tpu.memory_space<vmem>>, vector<1x64xf32>
    %cst_37 = arith.constant dense<0.000000e+00> : vector<8xf32>
    %58 = vector.multi_reduction <add>, %55, %cst_37 [1] : vector<8x64xf32> to vector<8xf32>
    %59 = vector.shape_cast %58 : vector<8xf32> to vector<8x1xf32>
    %cst_38 = arith.constant 6.400000e+01 : f32
    %60 = vector.broadcast %cst_38 : f32 to vector<8x1xf32>
    %61 = arith.divf %59, %60 : vector<8x1xf32>
    %62 = arith.mulf %55, %55 : vector<8x64xf32>
    %cst_39 = arith.constant dense<0.000000e+00> : vector<8xf32>
    %63 = vector.multi_reduction <add>, %62, %cst_39 [1] : vector<8x64xf32> to vector<8xf32>
    %64 = vector.shape_cast %63 : vector<8xf32> to vector<8x1xf32>
    %cst_40 = arith.constant 6.400000e+01 : f32
    %65 = vector.broadcast %cst_40 : f32 to vector<8x1xf32>
    %66 = arith.divf %64, %65 : vector<8x1xf32>
    %67 = arith.mulf %61, %61 : vector<8x1xf32>
    %68 = arith.subf %66, %67 : vector<8x1xf32>
    %cst_41 = arith.constant 0.000000e+00 : f32
    %69 = vector.broadcast %cst_41 : f32 to vector<8x1xf32>
    %70 = arith.maximumf %68, %69 : vector<8x1xf32>
    %cst_42 = arith.constant 9.99999974E-6 : f32
    %71 = vector.broadcast %cst_42 : f32 to vector<8x1xf32>
    %72 = arith.addf %70, %71 : vector<8x1xf32>
    %73 = math.rsqrt %72 : vector<8x1xf32>
    %74 = vector.broadcast %73 : vector<8x1xf32> to vector<8x64xf32>
    %75 = vector.broadcast %56 : vector<1x64xf32> to vector<8x64xf32>
    %76 = arith.mulf %74, %75 : vector<8x64xf32>
    %77 = vector.broadcast %61 : vector<8x1xf32> to vector<8x64xf32>
    %78 = arith.subf %55, %77 : vector<8x64xf32>
    %79 = arith.mulf %78, %76 : vector<8x64xf32>
    %80 = vector.broadcast %57 : vector<1x64xf32> to vector<8x64xf32>
    %81 = arith.addf %79, %80 : vector<8x64xf32>
    %82 = arith.truncf %81 : vector<8x64xf32> to vector<8x64xbf16>
    %c0_43 = arith.constant 0 : index
    %c0_44 = arith.constant 0 : index
    %83 = vector.load %arg14[%c0_43, %c0_44] : memref<64x128xbf16, #tpu.memory_space<vmem>>, vector<64x128xbf16>
    %cst_45 = arith.constant dense<0.000000e+00> : vector<8x128xf32>
    %84 = tpu.matmul %82, %83, %cst_45 {dimension_numbers = #tpu.dot_dimension_numbers<[1], [0], [0], [1], [0, 0, 1, 1], [], []>} : vector<8x64xbf16>, vector<64x128xbf16>, vector<8x128xf32> -> vector<8x128xf32>
    %c0_46 = arith.constant 0 : index
    %c0_47 = arith.constant 0 : index
    %85 = vector.load %arg15[%c0_46, %c0_47] : memref<1x128xf32, #tpu.memory_space<vmem>>, vector<1x128xf32>
    %86 = vector.broadcast %85 : vector<1x128xf32> to vector<8x128xf32>
    %87 = arith.addf %84, %86 : vector<8x128xf32>
    %c0_48 = arith.constant 0 : index
    %c0_49 = arith.constant 0 : index
    %88 = vector.load %arg16[%c0_48, %c0_49] : memref<8x128xf32, #tpu.memory_space<vmem>>, vector<8x128xf32>
    tpu.vector_store %arg16[%c0_48, %c0_49], %87 {strides = array<i32>} : memref<8x128xf32, #tpu.memory_space<vmem>>, vector<8x128xf32>,
    return
  }
  func.func @transform_0(%arg0: i32) -> (i32, i32) {
    %c0_i32 = arith.constant 0 : i32
    %c0_i32_0 = arith.constant 0 : i32
    return %arg0, %c0_i32 : i32, i32
  }
  func.func @transform_1(%arg0: i32) -> (i32, i32) {
    %c0_i32 = arith.constant 0 : i32
    %c0_i32_0 = arith.constant 0 : i32
    return %arg0, %c0_i32 : i32, i32
  }
  func.func @transform_2(%arg0: i32) -> (i32, i32) {
    %c0_i32 = arith.constant 0 : i32
    %c0_i32_0 = arith.constant 0 : i32
    %c0_i32_1 = arith.constant 0 : i32
    return %c0_i32, %c0_i32_0 : i32, i32
  }
  func.func @transform_3(%arg0: i32) -> (i32, i32) {
    %c0_i32 = arith.constant 0 : i32
    %c0_i32_0 = arith.constant 0 : i32
    %c0_i32_1 = arith.constant 0 : i32
    return %c0_i32, %c0_i32_0 : i32, i32
  }
  func.func @transform_4(%arg0: i32) -> (i32, i32) {
    %c0_i32 = arith.constant 0 : i32
    %c0_i32_0 = arith.constant 0 : i32
    %c0_i32_1 = arith.constant 0 : i32
    return %c0_i32, %c0_i32_0 : i32, i32
  }
  func.func @transform_5(%arg0: i32) -> (i32, i32) {
    %c0_i32 = arith.constant 0 : i32
    %c0_i32_0 = arith.constant 0 : i32
    %c0_i32_1 = arith.constant 0 : i32
    return %c0_i32, %c0_i32_0 : i32, i32
  }
  func.func @transform_6(%arg0: i32) -> (i32, i32) {
    %c0_i32 = arith.constant 0 : i32
    %c0_i32_0 = arith.constant 0 : i32
    %c0_i32_1 = arith.constant 0 : i32
    return %c0_i32, %c0_i32_0 : i32, i32
  }
  func.func @transform_7(%arg0: i32) -> (i32, i32) {
    %c0_i32 = arith.constant 0 : i32
    %c0_i32_0 = arith.constant 0 : i32
    %c0_i32_1 = arith.constant 0 : i32
    return %c0_i32, %c0_i32_0 : i32, i32
  }
  func.func @transform_8(%arg0: i32) -> (i32, i32) {
    %c0_i32 = arith.constant 0 : i32
    %c0_i32_0 = arith.constant 0 : i32
    %c0_i32_1 = arith.constant 0 : i32
    return %c0_i32, %c0_i32_0 : i32, i32
  }
  func.func @transform_9(%arg0: i32) -> (i32, i32) {
    %c0_i32 = arith.constant 0 : i32
    %c0_i32_0 = arith.constant 0 : i32
    %c0_i32_1 = arith.constant 0 : i32
    return %c0_i32, %c0_i32_0 : i32, i32
  }
  func.func @transform_10(%arg0: i32) -> (i32, i32) {
    %c0_i32 = arith.constant 0 : i32
    %c0_i32_0 = arith.constant 0 : i32
    %c0_i32_1 = arith.constant 0 : i32
    return %c0_i32, %c0_i32_0 : i32, i32
  }
  func.func @transform_11(%arg0: i32) -> (i32, i32) {
    %c0_i32 = arith.constant 0 : i32
    %c0_i32_0 = arith.constant 0 : i32
    %c0_i32_1 = arith.constant 0 : i32
    return %c0_i32, %c0_i32_0 : i32, i32
  }
  func.func @transform_12(%arg0: i32) -> (i32, i32) {
    %c0_i32 = arith.constant 0 : i32
    %c0_i32_0 = arith.constant 0 : i32
    %c0_i32_1 = arith.constant 0 : i32
    return %c0_i32, %c0_i32_0 : i32, i32
  }
  func.func @transform_13(%arg0: i32) -> (i32, i32) {
    %c0_i32 = arith.constant 0 : i32
    %c0_i32_0 = arith.constant 0 : i32
    %c0_i32_1 = arith.constant 0 : i32
    return %c0_i32, %c0_i32_0 : i32, i32
  }
  func.func @transform_14(%arg0: i32) -> (i32, i32) {
    %c0_i32 = arith.constant 0 : i32
    %c0_i32_0 = arith.constant 0 : i32
    %c0_i32_1 = arith.constant 0 : i32
    return %c0_i32, %c0_i32_0 : i32, i32
  }
  func.func @transform_15(%arg0: i32) -> (i32, i32) {
    %c0_i32 = arith.constant 0 : i32
    %c0_i32_0 = arith.constant 0 : i32
    return %arg0, %c0_i32 : i32, i32
  }
}

</mosaic_0001>

<llo_original>
// kernel: tpu_custom_call.1
$region0: #{tpu_custom_call.1}
  #allocation0 [shape = 'u32[]', space=smem, size = 0x4, offset = 0x4, fixed_abs, tag = 'smem constant byte address 0x4 - core index']
  #allocation1 [shape = 'u32[144,128]{1,0:T(1,128)}', space=vmem, size = 0x12000, scoped, tag = 'internal scratch']
  %s0 = inlined_call_operand.vmem [shape: f32[8,32], index: 0, kind: input, shape index: {}]
  %s1 = inlined_call_operand.hbm [shape: f32[8,16], index: 1, kind: input, shape index: {}]
  %s2 = inlined_call_operand.hbm [shape: bf16[16,128], index: 2, kind: input, shape index: {}]
  %s3 = inlined_call_operand.vmem [shape: f32[1,128], index: 3, kind: input, shape index: {}]
  %s4 = inlined_call_operand.hbm [shape: bf16[32,128], index: 4, kind: input, shape index: {}]
  %s5 = inlined_call_operand.vmem [shape: bf16[128,128], index: 5, kind: input, shape index: {}]
  %s6 = inlined_call_operand.vmem [shape: f32[1,128], index: 6, kind: input, shape index: {}]
  %s7 = inlined_call_operand.vmem [shape: f32[1,128], index: 7, kind: input, shape index: {}]
  %s8 = inlined_call_operand.vmem [shape: f32[1,128], index: 8, kind: input, shape index: {}]
  %s9 = inlined_call_operand.vmem [shape: bf16[128,64], index: 9, kind: input, shape index: {}]
  %s10 = inlined_call_operand.vmem [shape: f32[1,64], index: 10, kind: input, shape index: {}]
  %s11 = inlined_call_operand.vmem [shape: f32[1,64], index: 11, kind: input, shape index: {}]
  %s12 = inlined_call_operand.vmem [shape: f32[1,64], index: 12, kind: input, shape index: {}]
  %s13 = inlined_call_operand.vmem [shape: bf16[64,128], index: 13, kind: input, shape index: {}]
  %s14 = inlined_call_operand.vmem [shape: f32[1,128], index: 14, kind: input, shape index: {}]
  %s15 = inlined_call_operand.hbm [shape: f32[8,128], index: 15, kind: output, shape index: {}]
  %s16 = sld [smem:[#allocation0]]
  $region82: #{tpu_custom_call.1} parent=0
    _
  %s18 = ssub.s32 1, %s16
  %s19 = scalar_select 0, %s18, %s16
  $region1: #{tpu_custom_call.1} parent=0
    #allocation2 [shape = 'u8[4096]{0}', space=vmem, size = 0x1000, scoped, tag = 'input window, operand 1, single buffered']
    #allocation3 [shape = 's32[1]{0}', space=sflag, size = 0x4, scoped, tag = 'scoped memory for tpu_custom_call.1']
    #allocation4 [shape = 's32[1]{0}', space=sflag, size = 0x4, scoped, tag = 'scoped memory for tpu_custom_call.1']
    #allocation5 [shape = 'u8[4096]{0}', space=vmem, size = 0x1000, scoped, tag = 'input window, operand 2, single buffered']
    #allocation6 [shape = 's32[1]{0}', space=sflag, size = 0x4, scoped, tag = 'scoped memory for tpu_custom_call.1']
    #allocation7 [shape = 'u8[8192]{0}', space=vmem, size = 0x2000, scoped, tag = 'input window, operand 4, single buffered']
    #allocation8 [shape = 'u8[4096]{0}', space=vmem, size = 0x1000, scoped, tag = 'output window, operand 0, single buffered']
    %20 = vsyncpa [#allocation3], 0
    %21 = vsyncpa [#allocation6], 0
    %22 = vsyncpa [#allocation4], 0
    // Predicated region
    $region2: #{tpu_custom_call.1} parent=1 // pred_check
      _
    $region3: #{tpu_custom_call.1} parent=1 // pred_check_branch
      %24 = sbr.rel (0) target = $region5
    $region4: #{tpu_custom_call.1} parent=1 // pred_region
      _
    $region5: #{tpu_custom_call.1} parent=1 // pred_fallthru
      _
    // Predicated region
    $region6: #{tpu_custom_call.1} parent=1 // pred_check
      _
    $region7: #{tpu_custom_call.1} parent=1 // pred_check_branch
      %26 = sbr.rel (0) target = $region9
    $region8: #{tpu_custom_call.1} parent=1 // pred_region
      %s28 = ssub.s32 128, 128
      %29 = vsyncadd [#allocation3], %s28
      %s31 = sshll.u32 [#allocation2], 4
      %s32 = int_to_ptr.vmem [resolvable:$true] %s31
      %34 = dma.hbm_to_vmem [thread:$0]  %s1, 128, %s32, [#allocation3]
    $region9: #{tpu_custom_call.1} parent=1 // pred_fallthru
      _
    // Predicated region
    $region10: #{tpu_custom_call.1} parent=1 // pred_check
      _
    $region11: #{tpu_custom_call.1} parent=1 // pred_check_branch
      %36 = sbr.rel (0) target = $region13
    $region12: #{tpu_custom_call.1} parent=1 // pred_region
      %s38 = ssub.s32 128, 128
      %39 = vsyncadd [#allocation6], %s38
      %s40 = sshll.u32 [#allocation5], 4
      %s41 = int_to_ptr.vmem [resolvable:$true] %s40
      %46 = dma.hbm_to_vmem [thread:$0]  %s2, 128, %s41, [#allocation6], 64, 64, 4
    $region13: #{tpu_custom_call.1} parent=1 // pred_fallthru
      _
    // Predicated region
    $region14: #{tpu_custom_call.1} parent=1 // pred_check
      _
    $region15: #{tpu_custom_call.1} parent=1 // pred_check_branch
      %48 = sbr.rel (0) target = $region17
    $region16: #{tpu_custom_call.1} parent=1 // pred_region
      _
    $region17: #{tpu_custom_call.1} parent=1 // pred_fallthru
      _
    // Predicated region
    $region18: #{tpu_custom_call.1} parent=1 // pred_check
      _
    $region19: #{tpu_custom_call.1} parent=1 // pred_check_branch
      %50 = sbr.rel (0) target = $region21
    $region20: #{tpu_custom_call.1} parent=1 // pred_region
      %s52 = ssub.s32 256, 256
      %53 = vsyncadd [#allocation6], %s52
      %s54 = sshll.u32 [#allocation7], 4
      %s55 = int_to_ptr.vmem [resolvable:$true] %s54
      %60 = dma.hbm_to_vmem [thread:$0]  %s4, 256, %s55, [#allocation6], 64, 64, 4
    $region21: #{tpu_custom_call.1} parent=1 // pred_fallthru
      _
    // Predicated region
    $region22: #{tpu_custom_call.1} parent=1 // pred_check
      _
    $region23: #{tpu_custom_call.1} parent=1 // pred_check_branch
      %62 = sbr.rel (0) target = $region25
    $region24: #{tpu_custom_call.1} parent=1 // pred_region
      _
    $region25: #{tpu_custom_call.1} parent=1 // pred_fallthru
      _
    // Predicated region
    $region26: #{tpu_custom_call.1} parent=1 // pred_check
      _
    $region27: #{tpu_custom_call.1} parent=1 // pred_check_branch
      %64 = sbr.rel (0) target = $region29
    $region28: #{tpu_custom_call.1} parent=1 // pred_region
      _
    $region29: #{tpu_custom_call.1} parent=1 // pred_fallthru
      _
    // Predicated region
    $region30: #{tpu_custom_call.1} parent=1 // pred_check
      _
    $region31: #{tpu_custom_call.1} parent=1 // pred_check_branch
      %66 = sbr.rel (0) target = $region33
    $region32: #{tpu_custom_call.1} parent=1 // pred_region
      _
    $region33: #{tpu_custom_call.1} parent=1 // pred_fallthru
      _
    // Predicated region
    $region34: #{tpu_custom_call.1} parent=1 // pred_check
      _
    $region35: #{tpu_custom_call.1} parent=1 // pred_check_branch
      %68 = sbr.rel (0) target = $region37
    $region36: #{tpu_custom_call.1} parent=1 // pred_region
      _
    $region37: #{tpu_custom_call.1} parent=1 // pred_fallthru
      _
    // Predicated region
    $region38: #{tpu_custom_call.1} parent=1 // pred_check
      _
    $region39: #{tpu_custom_call.1} parent=1 // pred_check_branch
      %70 = sbr.rel (0) target = $region41
    $region40: #{tpu_custom_call.1} parent=1 // pred_region
      _
    $region41: #{tpu_custom_call.1} parent=1 // pred_fallthru
      _
    // Predicated region
    $region42: #{tpu_custom_call.1} parent=1 // pred_check
      _
    $region43: #{tpu_custom_call.1} parent=1 // pred_check_branch
      %72 = sbr.rel (0) target = $region45
    $region44: #{tpu_custom_call.1} parent=1 // pred_region
      _
    $region45: #{tpu_custom_call.1} parent=1 // pred_fallthru
      _
    // Predicated region
    $region46: #{tpu_custom_call.1} parent=1 // pred_check
      _
    $region47: #{tpu_custom_call.1} parent=1 // pred_check_branch
      %74 = sbr.rel (0) target = $region49
    $region48: #{tpu_custom_call.1} parent=1 // pred_region
      _
    $region49: #{tpu_custom_call.1} parent=1 // pred_fallthru
      _
    // Predicated region
    $region50: #{tpu_custom_call.1} parent=1 // pred_check
      _
    $region51: #{tpu_custom_call.1} parent=1 // pred_check_branch
      %76 = sbr.rel (0) target = $region53
    $region52: #{tpu_custom_call.1} parent=1 // pred_region
      _
    $region53: #{tpu_custom_call.1} parent=1 // pred_fallthru
      _
    // Predicated region
    $region54: #{tpu_custom_call.1} parent=1 // pred_check
      _
    $region55: #{tpu_custom_call.1} parent=1 // pred_check_branch
      %78 = sbr.rel (0) target = $region57
    $region56: #{tpu_custom_call.1} parent=1 // pred_region
      _
    $region57: #{tpu_custom_call.1} parent=1 // pred_fallthru
      _
    // Predicated region
    $region58: #{tpu_custom_call.1} parent=1 // pred_check
      _
    $region59: #{tpu_custom_call.1} parent=1 // pred_check_branch
      %80 = sbr.rel (0) target = $region61
    $region60: #{tpu_custom_call.1} parent=1 // pred_region
      _
    $region61: #{tpu_custom_call.1} parent=1 // pred_fallthru
      _
    // Predicated region
    $region62: #{tpu_custom_call.1} parent=1 // pred_check
      _
    $region63: #{tpu_custom_call.1} parent=1 // pred_check_branch
      %82 = sbr.rel (0) target = $region65
    $region64: #{tpu_custom_call.1} parent=1 // pred_region
      %83 = dma.done [#allocation3], 128
    $region65: #{tpu_custom_call.1} parent=1 // pred_fallthru
      _
    // Predicated region
    $region66: #{tpu_custom_call.1} parent=1 // pred_check
      _
    $region67: #{tpu_custom_call.1} parent=1 // pred_check_branch
      %85 = sbr.rel (0) target = $region69
    $region68: #{tpu_custom_call.1} parent=1 // pred_region
      %86 = dma.done [#allocation6], 128
    $region69: #{tpu_custom_call.1} parent=1 // pred_fallthru
      _
    // Predicated region
    $region70: #{tpu_custom_call.1} parent=1 // pred_check
      _
    $region71: #{tpu_custom_call.1} parent=1 // pred_check_branch
      %88 = sbr.rel (0) target = $region73
    $region72: #{tpu_custom_call.1} parent=1 // pred_region
      %89 = dma.done [#allocation6], 256
    $region73: #{tpu_custom_call.1} parent=1 // pred_fallthru
      _
    %v91 = vld [vmem:[%s0] sm:$0xff]
    %v92 = vpack.c.bf16 %v91, %v91
    %v93 = vld [vmem:[#allocation2] sm:$0xff]
    %v94 = vpack.c.bf16 %v93, %v93
    %v95 = vld [vmem:[#allocation5] sm:$0xf]
    %v96 = vld [vmem:[#allocation5 + $0x4] sm:$0xf]
    %v97 = vld [vmem:[%s3] sm:$0x1]
    %v99 = vlaneseq
    %v100 = vshrl.u32 %v99, 7
    %v101 = vsub.s32 0, %v100
    %v102 = vrot.slane %v97, %v101
    %v106 = vunpack.c.l.b16 %v95
    %v107 = vunpack.c.l.b16 %v96
    %v108 = vpack.c.b16 %v107, %v106
    %vm110 = vcmask 130048
    %v112 = vsel %vm110, %v94, 0
    %114 = vmatprep.subr.bf16.mxu0 0
    %115 = vmatpush1.bf16.msra.mxu0 0
    %116 = vmatprep.subr.bf16.mxu0 0
    %117 = vmatpush1.bf16.msra.mxu0 0
    %118 = vmatprep.subr.bf16.mxu0 0
    %119 = vmatpush1.bf16.msra.mxu0 0
    %120 = vmatprep.subr.bf16.mxu0 0
    %121 = vmatpush1.bf16.msra.mxu0 0
    %122 = vmatprep.subr.bf16.mxu0 0
    %123 = vmatpush1.bf16.msra.mxu0 0
    %124 = vmatprep.subr.bf16.mxu0 0
    %125 = vmatpush1.bf16.msra.mxu0 0
    %126 = vmatprep.subr.bf16.mxu0 0
    %127 = vmatpush1.bf16.msra.mxu0 0
    %128 = vmatprep.subr.bf16.mxu0 0
    %129 = vmatpush1.bf16.msra.mxu0 %v108
    %130 = vmatprep.subr.bf16.mxu0 0
    %131 = vmatpush2.bf16.msra.mxu0 0
    %132 = vmatprep.subr.bf16.mxu0 0
    %133 = vmatpush2.bf16.msra.mxu0 0
    %134 = vmatprep.subr.bf16.mxu0 0
    %135 = vmatpush2.bf16.msra.mxu0 0
    %136 = vmatprep.subr.bf16.mxu0 0
    %137 = vmatpush2.bf16.msra.mxu0 0
    %138 = vmatprep.subr.bf16.mxu0 0
    %139 = vmatpush2.bf16.msra.mxu0 0
    %140 = vmatprep.subr.bf16.mxu0 0
    %141 = vmatpush2.bf16.msra.mxu0 0
    %142 = vmatprep.subr.bf16.mxu0 0
    %143 = vmatpush2.bf16.msra.mxu0 0
    %144 = vmatprep.subr.bf16.mxu0 0
    %145 = vmatpush2.bf16.msra.mxu0 0
    %146 = vmatprep.mubr.bf16.mxu0 0
    %147 = vmatmul.mubr.bf16.gmra.mxu0 %v112
    %v148 = vpop.f32.mrf.mxu0
    %v149 = vadd.f32 %v102, %v148
    %v150 = vpop.f32.mrf.mxu0
    %v151 = vpop.f32.mrf.mxu0
    %v152 = vpop.f32.mrf.mxu0
    %153 = vdwg.mxu0
    %v154 = vmax.f32 %v149, 0.0
    %v155 = vld [vmem:[#allocation7] sm:$0xf]
    %v156 = vld [vmem:[#allocation7 + $0x4] sm:$0xf]
    %v157 = vld [vmem:[#allocation7 + $0x8] sm:$0xf]
    %v158 = vld [vmem:[#allocation7 + $0xc] sm:$0xf]
    %v159 = vpack.c.bf16 %v154, %v154
    %v160 = vld [vmem:[%s5] sm:$0xf]
    %v161 = vld [vmem:[%s5 + $0x4] sm:$0xf]
    %v162 = vld [vmem:[%s5 + $0x8] sm:$0xf]
    %v163 = vld [vmem:[%s5 + $0xc] sm:$0xf]
    %v164 = vld [vmem:[%s5 + $0x10] sm:$0xf]
    %v165 = vld [vmem:[%s5 + $0x14] sm:$0xf]
    %v166 = vld [vmem:[%s5 + $0x18] sm:$0xf]
    %v167 = vld [vmem:[%s5 + $0x1c] sm:$0xf]
    %v168 = vld [vmem:[%s5 + $0x20] sm:$0xf]
    %v169 = vld [vmem:[%s5 + $0x24] sm:$0xf]
    %v170 = vld [vmem:[%s5 + $0x28] sm:$0xf]
    %v171 = vld [vmem:[%s5 + $0x2c] sm:$0xf]
    %v172 = vld [vmem:[%s5 + $0x30] sm:$0xf]
    %v173 = vld [vmem:[%s5 + $0x34] sm:$0xf]
    %v174 = vld [vmem:[%s5 + $0x38] sm:$0xf]
    %v175 = vld [vmem:[%s5 + $0x3c] sm:$0xf]
    %v192 = vunpack.c.l.b16 %v160
    %v193 = vunpack.c.l.b16 %v161
    %v194 = vunpack.c.l.b16 %v162
    %v195 = vunpack.c.l.b16 %v163
    %v196 = vunpack.c.l.b16 %v164
    %v197 = vunpack.c.l.b16 %v165
    %v198 = vunpack.c.l.b16 %v166
    %v199 = vunpack.c.l.b16 %v167
    %v200 = vunpack.c.l.b16 %v168
    %v201 = vunpack.c.l.b16 %v169
    %v202 = vunpack.c.l.b16 %v170
    %v203 = vunpack.c.l.b16 %v171
    %v204 = vunpack.c.l.b16 %v172
    %v205 = vunpack.c.l.b16 %v173
    %v206 = vunpack.c.l.b16 %v174
    %v207 = vunpack.c.l.b16 %v175
    %v208 = vpack.c.b16 %v193, %v192
    %v209 = vpack.c.b16 %v195, %v194
    %v210 = vpack.c.b16 %v197, %v196
    %v211 = vpack.c.b16 %v199, %v198
    %v212 = vpack.c.b16 %v201, %v200
    %v213 = vpack.c.b16 %v203, %v202
    %v214 = vpack.c.b16 %v205, %v204
    %v215 = vpack.c.b16 %v207, %v206
    %224 = vmatprep.subr.bf16.mxu0 0
    %225 = vmatpush1.bf16.msra.mxu0 %v215
    %226 = vmatprep.subr.bf16.mxu0 0
    %227 = vmatpush1.bf16.msra.mxu0 %v214
    %228 = vmatprep.subr.bf16.mxu0 0
    %229 = vmatpush1.bf16.msra.mxu0 %v213
    %230 = vmatprep.subr.bf16.mxu0 0
    %231 = vmatpush1.bf16.msra.mxu0 %v212
    %232 = vmatprep.subr.bf16.mxu0 0
    %233 = vmatpush1.bf16.msra.mxu0 %v211
    %234 = vmatprep.subr.bf16.mxu0 0
    %235 = vmatpush1.bf16.msra.mxu0 %v210
    %236 = vmatprep.subr.bf16.mxu0 0
    %237 = vmatpush1.bf16.msra.mxu0 %v209
    %238 = vmatprep.subr.bf16.mxu0 0
    %239 = vmatpush1.bf16.msra.mxu0 %v208
    %240 = vmatprep.subr.bf16.mxu0 0
    %241 = vmatpush2.bf16.msra.mxu0 0
    %242 = vmatprep.subr.bf16.mxu0 0
    %243 = vmatpush2.bf16.msra.mxu0 0
    %244 = vmatprep.subr.bf16.mxu0 0
    %245 = vmatpush2.bf16.msra.mxu0 0
    %246 = vmatprep.subr.bf16.mxu0 0
    %247 = vmatpush2.bf16.msra.mxu0 0
    %248 = vmatprep.subr.bf16.mxu0 0
    %249 = vmatpush2.bf16.msra.mxu0 0
    %250 = vmatprep.subr.bf16.mxu0 0
    %251 = vmatpush2.bf16.msra.mxu0 0
    %252 = vmatprep.subr.bf16.mxu0 0
    %253 = vmatpush2.bf16.msra.mxu0 0
    %254 = vmatprep.subr.bf16.mxu0 0
    %255 = vmatpush2.bf16.msra.mxu0 0
    %256 = vmatprep.mubr.bf16.mxu0 0
    %257 = vmatmul.mubr.bf16.gmra.mxu0 %v159
    %v258 = vpop.f32.mrf.mxu0
    %v259 = vadd.f32 0.0, %v258
    %v260 = vpop.f32.mrf.mxu0
    %v261 = vpop.f32.mrf.mxu0
    %v262 = vpop.f32.mrf.mxu0
    %263 = vdwg.mxu0
    %v268 = vunpack.c.l.b16 %v155
    %v269 = vunpack.c.l.b16 %v156
    %v270 = vunpack.c.l.b16 %v157
    %v271 = vunpack.c.l.b16 %v158
    %v272 = vpack.c.b16 %v269, %v268
    %v273 = vpack.c.b16 %v271, %v270
    %vm276 = vcmask 261120
    %v278 = vsel %vm276, %v92, 0
    %280 = vmatprep.subr.bf16.mxu0 0
    %281 = vmatpush1.bf16.msra.mxu0 0
    %282 = vmatprep.subr.bf16.mxu0 0
    %283 = vmatpush1.bf16.msra.mxu0 0
    %284 = vmatprep.subr.bf16.mxu0 0
    %285 = vmatpush1.bf16.msra.mxu0 0
    %286 = vmatprep.subr.bf16.mxu0 0
    %287 = vmatpush1.bf16.msra.mxu0 0
    %288 = vmatprep.subr.bf16.mxu0 0
    %289 = vmatpush1.bf16.msra.mxu0 0
    %290 = vmatprep.subr.bf16.mxu0 0
    %291 = vmatpush1.bf16.msra.mxu0 0
    %292 = vmatprep.subr.bf16.mxu0 0
    %293 = vmatpush1.bf16.msra.mxu0 %v273
    %294 = vmatprep.subr.bf16.mxu0 0
    %295 = vmatpush1.bf16.msra.mxu0 %v272
    %296 = vmatprep.subr.bf16.mxu0 0
    %297 = vmatpush2.bf16.msra.mxu0 0
    %298 = vmatprep.subr.bf16.mxu0 0
    %299 = vmatpush2.bf16.msra.mxu0 0
    %300 = vmatprep.subr.bf16.mxu0 0
    %301 = vmatpush2.bf16.msra.mxu0 0
    %302 = vmatprep.subr.bf16.mxu0 0
    %303 = vmatpush2.bf16.msra.mxu0 0
    %304 = vmatprep.subr.bf16.mxu0 0
    %305 = vmatpush2.bf16.msra.mxu0 0
    %306 = vmatprep.subr.bf16.mxu0 0
    %307 = vmatpush2.bf16.msra.mxu0 0
    %308 = vmatprep.subr.bf16.mxu0 0
    %309 = vmatpush2.bf16.msra.mxu0 0
    %310 = vmatprep.subr.bf16.mxu0 0
    %311 = vmatpush2.bf16.msra.mxu0 0
    %312 = vmatprep.mubr.bf16.mxu0 0
    %313 = vmatmul.mubr.bf16.gmra.mxu0 %v278
    %v314 = vpop.f32.mrf.mxu0
    %v315 = vadd.f32 %v259, %v314
    %v316 = vpop.f32.mrf.mxu0
    %v317 = vpop.f32.mrf.mxu0
    %v318 = vpop.f32.mrf.mxu0
    %319 = vdwg.mxu0
    %v320 = vld [vmem:[%s6] sm:$0x1]
    %v322 = vlaneseq
    %v323 = vshrl.u32 %v322, 7
    %v324 = vsub.s32 0, %v323
    %v325 = vrot.slane %v320, %v324
    %v327 = vadd.f32 %v315, %v325
    %v328 = vmax.f32 %v327, 0.0
    %v329 = vld [vmem:[%s7] sm:$0x1]
    %v330 = vld [vmem:[%s8] sm:$0x1]
    %331 = vadd.xlane.f32.xlu0 %v328
    %v332 = vpop.xlane.xlu0 %331
    %v333 = vrcp.pop 128.0
    %v334 = vmul.f32 %v332, %v333
    %v335 = vmul.f32 %v328, %v328
    %336 = vadd.xlane.f32.xlu0 %v335
    %v337 = vpop.xlane.xlu0 %336
    %v338 = vmul.f32 %v337, %v333
    %v339 = vmul.f32 %v334, %v334
    %v340 = vsub.f32 %v338, %v339
    %v341 = vmax.f32 %v340, 0.0
    %v342 = vadd.f32 %v341, 1e-05
    %v343 = vrsqrt.pop %v342
    %v345 = vlaneseq
    %v346 = vshrl.u32 %v345, 7
    %v347 = vsub.s32 0, %v346
    %v348 = vrot.slane %v329, %v347
    %v350 = vmul.f32 %v343, %v348
    %v351 = vsub.f32 %v328, %v334
    %v352 = vmul.f32 %v351, %v350
    %v354 = vlaneseq
    %v355 = vshrl.u32 %v354, 7
    %v356 = vsub.s32 0, %v355
    %v357 = vrot.slane %v330, %v356
    %v359 = vadd.f32 %v352, %v357
    %v360 = vpack.c.bf16 %v359, %v359
    %v361 = vld [vmem:[%s9] sm:$0xf]
    %v362 = vld [vmem:[%s9 + $0x4] sm:$0xf]
    %v363 = vld [vmem:[%s9 + $0x8] sm:$0xf]
    %v364 = vld [vmem:[%s9 + $0xc] sm:$0xf]
    %v365 = vld [vmem:[%s9 + $0x10] sm:$0xf]
    %v366 = vld [vmem:[%s9 + $0x14] sm:$0xf]
    %v367 = vld [vmem:[%s9 + $0x18] sm:$0xf]
    %v368 = vld [vmem:[%s9 + $0x1c] sm:$0xf]
    %v369 = vld [vmem:[%s9 + $0x20] sm:$0xf]
    %v370 = vld [vmem:[%s9 + $0x24] sm:$0xf]
    %v371 = vld [vmem:[%s9 + $0x28] sm:$0xf]
    %v372 = vld [vmem:[%s9 + $0x2c] sm:$0xf]
    %v373 = vld [vmem:[%s9 + $0x30] sm:$0xf]
    %v374 = vld [vmem:[%s9 + $0x34] sm:$0xf]
    %v375 = vld [vmem:[%s9 + $0x38] sm:$0xf]
    %v376 = vld [vmem:[%s9 + $0x3c] sm:$0xf]
    %v377 = vld [vmem:[%s10] sm:$0x1]
    %v379 = vlaneseq
    %v380 = vshrl.u32 %v379, 7
    %v381 = vsub.s32 0, %v380
    %v382 = vrot.slane %v377, %v381
    %v400 = vunpack.c.l.b16 %v361
    %v401 = vunpack.c.l.b16 %v362
    %v402 = vunpack.c.l.b16 %v363
    %v403 = vunpack.c.l.b16 %v364
    %v404 = vunpack.c.l.b16 %v365
    %v405 = vunpack.c.l.b16 %v366
    %v406 = vunpack.c.l.b16 %v367
    %v407 = vunpack.c.l.b16 %v368
    %v408 = vunpack.c.l.b16 %v369
    %v409 = vunpack.c.l.b16 %v370
    %v410 = vunpack.c.l.b16 %v371
    %v411 = vunpack.c.l.b16 %v372
    %v412 = vunpack.c.l.b16 %v373
    %v413 = vunpack.c.l.b16 %v374
    %v414 = vunpack.c.l.b16 %v375
    %v415 = vunpack.c.l.b16 %v376
    %v416 = vpack.c.b16 %v401, %v400
    %v417 = vpack.c.b16 %v403, %v402
    %v418 = vpack.c.b16 %v405, %v404
    %v419 = vpack.c.b16 %v407, %v406
    %v420 = vpack.c.b16 %v409, %v408
    %v421 = vpack.c.b16 %v411, %v410
    %v422 = vpack.c.b16 %v413, %v412
    %v423 = vpack.c.b16 %v415, %v414
    %432 = vmatprep.subr.bf16.mxu0 0
    %433 = vmatpush1.bf16.msra.mxu0 %v423
    %434 = vmatprep.subr.bf16.mxu0 0
    %435 = vmatpush1.bf16.msra.mxu0 %v422
    %436 = vmatprep.subr.bf16.mxu0 0
    %437 = vmatpush1.bf16.msra.mxu0 %v421
    %438 = vmatprep.subr.bf16.mxu0 0
    %439 = vmatpush1.bf16.msra.mxu0 %v420
    %440 = vmatprep.subr.bf16.mxu0 0
    %441 = vmatpush1.bf16.msra.mxu0 %v419
    %442 = vmatprep.subr.bf16.mxu0 0
    %443 = vmatpush1.bf16.msra.mxu0 %v418
    %444 = vmatprep.subr.bf16.mxu0 0
    %445 = vmatpush1.bf16.msra.mxu0 %v417
    %446 = vmatprep.subr.bf16.mxu0 0
    %447 = vmatpush1.bf16.msra.mxu0 %v416
    %448 = vmatprep.subr.bf16.mxu0 0
    %449 = vmatpush2.bf16.msra.mxu0 0
    %450 = vmatprep.subr.bf16.mxu0 0
    %451 = vmatpush2.bf16.msra.mxu0 0
    %452 = vmatprep.subr.bf16.mxu0 0
    %453 = vmatpush2.bf16.msra.mxu0 0
    %454 = vmatprep.subr.bf16.mxu0 0
    %455 = vmatpush2.bf16.msra.mxu0 0
    %456 = vmatprep.subr.bf16.mxu0 0
    %457 = vmatpush2.bf16.msra.mxu0 0
    %458 = vmatprep.subr.bf16.mxu0 0
    %459 = vmatpush2.bf16.msra.mxu0 0
    %460 = vmatprep.subr.bf16.mxu0 0
    %461 = vmatpush2.bf16.msra.mxu0 0
    %462 = vmatprep.subr.bf16.mxu0 0
    %463 = vmatpush2.bf16.msra.mxu0 0
    %464 = vmatprep.mubr.bf16.mxu0 0
    %465 = vmatmul.mubr.bf16.gmra.mxu0 %v360
    %v466 = vpop.f32.mrf.mxu0
    %v467 = vadd.f32 %v382, %v466
    %v468 = vpop.f32.mrf.mxu0
    %v469 = vpop.f32.mrf.mxu0
    %v470 = vpop.f32.mrf.mxu0
    %471 = vdwg.mxu0
    %v472 = vmax.f32 %v467, 0.0
    %v473 = vld [vmem:[%s11] sm:$0x1]
    %v474 = vld [vmem:[%s12] sm:$0x1]
    %vm475 = vcmask 523264
    %v476 = vsel %vm475, %v472, 0.0
    %477 = vadd.xlane.f32.xlu0 %v476
    %v478 = vpop.xlane.xlu0 %477
    %v479 = vrcp.pop 64.0
    %v480 = vmul.f32 %v478, %v479
    %v481 = vmul.f32 %v472, %v472
    %v482 = vsel %vm475, %v481, 0.0
    %483 = vadd.xlane.f32.xlu0 %v482
    %v484 = vpop.xlane.xlu0 %483
    %v485 = vmul.f32 %v484, %v479
    %v486 = vmul.f32 %v480, %v480
    %v487 = vsub.f32 %v485, %v486
    %v488 = vmax.f32 %v487, 0.0
    %v489 = vadd.f32 %v488, 1e-05
    %v490 = vrsqrt.pop %v489
    %v492 = vlaneseq
    %v493 = vshrl.u32 %v492, 7
    %v494 = vsub.s32 0, %v493
    %v495 = vrot.slane %v473, %v494
    %v497 = vmul.f32 %v490, %v495
    %v498 = vsub.f32 %v472, %v480
    %v499 = vmul.f32 %v498, %v497
    %v501 = vlaneseq
    %v502 = vshrl.u32 %v501, 7
    %v503 = vsub.s32 0, %v502
    %v504 = vrot.slane %v474, %v503
    %v506 = vadd.f32 %v499, %v504
    %v507 = vpack.c.bf16 %v506, %v506
    %v508 = vld [vmem:[%s13] sm:$0xf]
    %v509 = vld [vmem:[%s13 + $0x4] sm:$0xf]
    %v510 = vld [vmem:[%s13 + $0x8] sm:$0xf]
    %v511 = vld [vmem:[%s13 + $0xc] sm:$0xf]
    %v512 = vld [vmem:[%s13 + $0x10] sm:$0xf]
    %v513 = vld [vmem:[%s13 + $0x14] sm:$0xf]
    %v514 = vld [vmem:[%s13 + $0x18] sm:$0xf]
    %v515 = vld [vmem:[%s13 + $0x1c] sm:$0xf]
    %v516 = vld [vmem:[%s14] sm:$0x1]
    %v518 = vlaneseq
    %v519 = vshrl.u32 %v518, 7
    %v520 = vsub.s32 0, %v519
    %v521 = vrot.slane %v516, %v520
    %v531 = vunpack.c.l.b16 %v508
    %v532 = vunpack.c.l.b16 %v509
    %v533 = vunpack.c.l.b16 %v510
    %v534 = vunpack.c.l.b16 %v511
    %v535 = vunpack.c.l.b16 %v512
    %v536 = vunpack.c.l.b16 %v513
    %v537 = vunpack.c.l.b16 %v514
    %v538 = vunpack.c.l.b16 %v515
    %v539 = vpack.c.b16 %v532, %v531
    %v540 = vpack.c.b16 %v534, %v533
    %v541 = vpack.c.b16 %v536, %v535
    %v542 = vpack.c.b16 %v538, %v537
    %v548 = vsel %vm475, %v507, 0
    %550 = vmatprep.subr.bf16.mxu0 0
    %551 = vmatpush1.bf16.msra.mxu0 0
    %552 = vmatprep.subr.bf16.mxu0 0
    %553 = vmatpush1.bf16.msra.mxu0 0
    %554 = vmatprep.subr.bf16.mxu0 0
    %555 = vmatpush1.bf16.msra.mxu0 0
    %556 = vmatprep.subr.bf16.mxu0 0
    %557 = vmatpush1.bf16.msra.mxu0 0
    %558 = vmatprep.subr.bf16.mxu0 0
    %559 = vmatpush1.bf16.msra.mxu0 %v542
    %560 = vmatprep.subr.bf16.mxu0 0
    %561 = vmatpush1.bf16.msra.mxu0 %v541
    %562 = vmatprep.subr.bf16.mxu0 0
    %563 = vmatpush1.bf16.msra.mxu0 %v540
    %564 = vmatprep.subr.bf16.mxu0 0
    %565 = vmatpush1.bf16.msra.mxu0 %v539
    %566 = vmatprep.subr.bf16.mxu0 0
    %567 = vmatpush2.bf16.msra.mxu0 0
    %568 = vmatprep.subr.bf16.mxu0 0
    %569 = vmatpush2.bf16.msra.mxu0 0
    %570 = vmatprep.subr.bf16.mxu0 0
    %571 = vmatpush2.bf16.msra.mxu0 0
    %572 = vmatprep.subr.bf16.mxu0 0
    %573 = vmatpush2.bf16.msra.mxu0 0
    %574 = vmatprep.subr.bf16.mxu0 0
    %575 = vmatpush2.bf16.msra.mxu0 0
    %576 = vmatprep.subr.bf16.mxu0 0
    %577 = vmatpush2.bf16.msra.mxu0 0
    %578 = vmatprep.subr.bf16.mxu0 0
    %579 = vmatpush2.bf16.msra.mxu0 0
    %580 = vmatprep.subr.bf16.mxu0 0
    %581 = vmatpush2.bf16.msra.mxu0 0
    %582 = vmatprep.mubr.bf16.mxu0 0
    %583 = vmatmul.mubr.bf16.gmra.mxu0 %v548
    %v584 = vpop.f32.mrf.mxu0
    %v585 = vadd.f32 %v521, %v584
    %v586 = vpop.f32.mrf.mxu0
    %v587 = vpop.f32.mrf.mxu0
    %v588 = vpop.f32.mrf.mxu0
    %589 = vdwg.mxu0
    %590 = vst [vmem:[#allocation8] sm:$0xff] %v585
    // Predicated region
    $region74: #{tpu_custom_call.1} parent=1 // pred_check
      _
    $region75: #{tpu_custom_call.1} parent=1 // pred_check_branch
      %592 = sbr.rel (0) target = $region77
    $region76: #{tpu_custom_call.1} parent=1 // pred_region
      %s594 = ssub.s32 128, 128
      %595 = vsyncadd [#allocation4], %s594
      %s597 = sshll.u32 [#allocation8], 4
      %s598 = int_to_ptr.vmem [resolvable:$true] %s597
      %600 = dma.vmem_to_hbm [thread:$0]  %s598, 128, %s15, [#allocation4]
    $region77: #{tpu_custom_call.1} parent=1 // pred_fallthru
      _
    // Predicated region
    $region78: #{tpu_custom_call.1} parent=1 // pred_check
      _
    $region79: #{tpu_custom_call.1} parent=1 // pred_check_branch
      %602 = sbr.rel (0) target = $region81
    $region80: #{tpu_custom_call.1} parent=1 // pred_region
      %603 = dma.done [#allocation4], 128
    $region81: #{tpu_custom_call.1} parent=1 // pred_fallthru
      _
    %604 = vsyncpa [#allocation3], 1
    %605 = vsyncpa [#allocation6], 1
    %606 = vsyncpa [#allocation4], 1

</llo_original>
